<compile_context>
chip_gen: v7x
topology: tpu7x:2x2x1
jax: 0.10.0
libtpu: 0.0.40
codegen_flags: <defaults>
</compile_context>

<pallas_src>
import functools

import jax
import jax.numpy as jnp
from jax.experimental import pallas as pl
from jax.experimental.pallas import tpu as pltpu

NEG_INF = -1e30


def _round_up(x, m):
    return (x + m - 1) // m * m


def _vmem_limit_bytes(n, K, f_pad, h_pad, c_pad):
    """Explicit scoped-VMEM budget: double-buffered blocks + kernel temps."""
    f32 = 4
    blocks = 2 * f32 * (n * n + n * f_pad + n * c_pad
                        + K * f_pad * h_pad + K * h_pad * c_pad + h_pad + c_pad)
    temps = 8 * f32 * n * max(f_pad, h_pad, c_pad)   # T stack, h, acc, y
    need = blocks + temps
    # generous headroom, clamped well under v7x's 64 MiB physical VMEM
    return int(min(max(4 * need, 16 * 1024 * 1024), 48 * 1024 * 1024))


# ----------------------------------------------------------------------------
# Fused Pallas kernel (one graph per grid point)
# ----------------------------------------------------------------------------
def _chebnet_fused_kernel(l_ref, x_ref, w1_ref, b1_ref, w2_ref, b2_ref, o_ref, *, K):
    """
    l_ref  : (N, N)           scaled Laplacian L_hat (lambda_max = 2)
    x_ref  : (N, Fpad)        node features, zero-padded to 128 lanes
    w1_ref : (K, Fpad, Hpad)  layer-1 weights (zero-padded)
    b1_ref : (1, Hpad)        zero in pad lanes
    w2_ref : (K, Hpad, Cpad)  layer-2 weights (zero-padded)
    b2_ref : (1, Cpad)        -1e30 in pad lanes -> logits arrive pre-masked
    o_ref  : (N, Cpad)        log-softmax output (first num_classes lanes valid)
    """
    L = l_ref[...]

    def cheb_conv(feat, w, b):
        # sum_k T_k(L) feat @ W_k, accumulated per order (no lane concat,
        # every operand is 128-lane dense).
        acc = jnp.dot(feat, w[0], preferred_element_type=jnp.float32)
        if K >= 2:
            t_prev = feat
            t_cur = jnp.dot(L, feat, preferred_element_type=jnp.float32)
            acc = acc + jnp.dot(t_cur, w[1], preferred_element_type=jnp.float32)
            for k in range(2, K):
                # T_k = 2 L T_{k-1} - T_{k-2}; the 2x is a cheap scalar VPU mul
                # hidden under the MXU (no duplicated 2*L operand anymore).
                t_next = (2.0 * jnp.dot(L, t_cur, preferred_element_type=jnp.float32)
                          - t_prev)
                acc = acc + jnp.dot(t_next, w[k], preferred_element_type=jnp.float32)
                t_prev, t_cur = t_cur, t_next
        return acc + b

    w1 = w1_ref[...]
    w2 = w2_ref[...]

    # ---- Layer 1: ChebConv + ReLU ------------------------------------------
    h = jnp.maximum(cheb_conv(x_ref[...], w1, b1_ref[...]), 0.0)
    # F.dropout(p=0.6, training=False) is the identity in eval mode.
    # TODO(synk): training-mode dropout (pltpu.prng_* mask) not implemented.

    # ---- Layer 2: ChebConv (h stays in VMEM; pad-lane logits = -1e30) ------
    y = cheb_conv(h, w2, b2_ref[...])

    # ---- log_softmax over the 128-lane class axis ---------------------------
    m = jnp.max(y, axis=1, keepdims=True)
    s = y - m
    lse = jnp.log(jnp.sum(jnp.exp(s), axis=1, keepdims=True))
    o_ref[...] = s - lse


# ----------------------------------------------------------------------------
# Wrappers
# ----------------------------------------------------------------------------
def chebnet_forward_batched(x_b, l_b, params):
    """x_b: (B, N, Fin), l_b: (B, N, N)  ->  (B, N, num_classes) log-probs.
    One graph per grid point, 'parallel' grid axis (v7x 2nd TensorCore)."""
    w1, b1, w2, b2 = params
    K, fin, fh = w1.shape
    nclass = w2.shape[2]
    B, n, _ = x_b.shape

    f_pad = _round_up(fin, 128)
    h_pad = _round_up(fh, 128)
    c_pad = _round_up(nclass, 128)

    # Layout plumbing only (zero-pad to lane-dense 128-wide tiles). b2's pad
    # lanes carry -1e30 so padded logits arrive pre-masked (W2 pad entries are
    # exactly zero, h pad lanes are exactly zero).
    xp = jnp.pad(x_b, ((0, 0), (0, 0), (0, f_pad - fin)))
    w1p = jnp.pad(w1, ((0, 0), (0, f_pad - fin), (0, h_pad - fh)))
    b1p = jnp.pad(b1, (0, h_pad - fh)).reshape(1, h_pad)
    w2p = jnp.pad(w2, ((0, 0), (0, h_pad - fh), (0, c_pad - nclass)))
    b2p = jnp.pad(b2, (0, c_pad - nclass),
                  constant_values=NEG_INF).reshape(1, c_pad)

    const3 = lambda b: (0, 0, 0)
    const2 = lambda b: (0, 0)
    out = pl.pallas_call(
        functools.partial(_chebnet_fused_kernel, K=K),
        out_shape=jax.ShapeDtypeStruct((B, n, c_pad), jnp.float32),
        grid=(B,),
        in_specs=[
            pl.BlockSpec((None, n, n), lambda b: (b, 0, 0)),      # L_hat (per graph)
            pl.BlockSpec((None, n, f_pad), lambda b: (b, 0, 0)),  # x     (per graph)
            pl.BlockSpec((K, f_pad, h_pad), const3),              # W1 (resident)
            pl.BlockSpec((1, h_pad), const2),                     # b1 (resident)
            pl.BlockSpec((K, h_pad, c_pad), const3),              # W2 (resident)
            pl.BlockSpec((1, c_pad), const2),                     # b2 (resident)
        ],
        out_specs=pl.BlockSpec((None, n, c_pad), lambda b: (b, 0, 0)),
        compiler_params=pltpu.CompilerParams(
            dimension_semantics=("parallel",),
            vmem_limit_bytes=_vmem_limit_bytes(n, K, f_pad, h_pad, c_pad)),
    )(l_b, xp, w1p, b1p, w2p, b2p)
    # TODO(synk): for very large N, replace the dense N*N L_hat with a sparse
    # PrefetchScalarGridSpec row-pointer/neighbor-list formulation (O(nnz) DMA)
    # and a bf16 L operand (keep recursion intermediates in f32).
    return out[:, :, :nclass]


def chebnet_forward(x, l_hat, params):
    """Single-graph forward, identical semantics to the PyTorch module."""
    return chebnet_forward_batched(x[None], l_hat[None], params)[0]


# ----------------------------------------------------------------------------
# Pure-JAX reference (for correctness check only)
# ----------------------------------------------------------------------------
def chebnet_reference(x, l_hat, params):
    w1, b1, w2, b2 = params

    def cheb(feat, w, b):
        k_order = w.shape[0]
        tx_prev = feat
        out = tx_prev @ w[0]
        if k_order >= 2:
            tx_cur = l_hat @ feat
            out = out + tx_cur @ w[1]
            for k in range(2, k_order):
                tx_next = 2.0 * (l_hat @ tx_cur) - tx_prev
                out = out + tx_next @ w[k]
                tx_prev, tx_cur = tx_cur, tx_next
        return out + b

    h = jnp.maximum(cheb(x, w1, b1), 0.0)
    y = cheb(h, w2, b2)
    return jax.nn.log_softmax(y, axis=1)


# ----------------------------------------------------------------------------
# Graph glue: dense scaled Laplacian, matching PyG ChebConv defaults
# (normalization='sym', lambda_max=2.0)  =>  L_hat = -D^{-1/2} A D^{-1/2},
# with self-loops removed and duplicate edge weights summed.
# ----------------------------------------------------------------------------
def build_scaled_laplacian(edge_index, num_nodes):
    src, dst = edge_index[0], edge_index[1]
    adj = jnp.zeros((num_nodes, num_nodes), jnp.float32).at[src, dst].add(1.0)
    adj = adj * (1.0 - jnp.eye(num_nodes, dtype=jnp.float32))  # drop self-loops
    deg = adj.sum(axis=1)
    d_inv_sqrt = jnp.where(deg > 0, 1.0 / jnp.sqrt(jnp.maximum(deg, 1e-12)), 0.0)
    return -(d_inv_sqrt[:, None] * adj * d_inv_sqrt[None, :])


# ----------------------------------------------------------------------------
# Main
# ----------------------------------------------------------------------------
if __name__ == "__main__":
    num_nodes = 32
    num_node_features = 16
    h_feats = 32
    num_classes = 8
    K = 3

    key = jax.random.PRNGKey(0)
    kx, ke, ke2, k1, k2 = jax.random.split(key, 5)

    # Node features
    x = jax.random.normal(kx, (num_nodes, num_node_features), jnp.float32)

    # Random undirected graph: 48 random directed edges + their reverses
    def random_graph(k, e=48):
        pairs = jax.random.randint(k, (2, e), 0, num_nodes)
        return jnp.concatenate([pairs, jnp.stack([pairs[1], pairs[0]])], axis=1)

    edge_index = random_graph(ke)
    l_hat = build_scaled_laplacian(edge_index, num_nodes)

    # Deterministic parameter init (ChebConv holds K weight matrices + bias)
    def glorot(k, shape):
        fan_in, fan_out = shape[-2], shape[-1]
        scale = jnp.sqrt(6.0 / (fan_in + fan_out))
        return jax.random.uniform(k, shape, jnp.float32, -scale, scale)

    w1 = glorot(k1, (K, num_node_features, h_feats))
    b1 = jnp.zeros((h_feats,), jnp.float32)
    w2 = glorot(k2, (K, h_feats, num_classes))
    b2 = jnp.zeros((num_classes,), jnp.float32)
    params = (w1, b1, w2, b2)

    # --- single-graph forward (matches the PyTorch module semantics) --------
    fwd = jax.jit(chebnet_forward)
    out = jax.block_until_ready(fwd(x, l_hat, params))
    assert out.shape == (num_nodes, num_classes)
    row_sums = jnp.exp(out).sum(axis=1)
    assert bool(jnp.all(jnp.abs(row_sums - 1.0) < 1e-4))
    ref = chebnet_reference(x, l_hat, params)
    assert bool(jnp.allclose(out, ref, atol=1e-3, rtol=1e-3))

    # --- batched forward: one graph per 'parallel' grid point ----------------
    l_hat2 = build_scaled_laplacian(random_graph(ke2), num_nodes)
    x2 = jnp.flip(x, axis=0)
    xb = jnp.stack([x, x2])
    lb = jnp.stack([l_hat, l_hat2])
    fwd_b = jax.jit(chebnet_forward_batched)
    out_b = jax.block_until_ready(fwd_b(xb, lb, params))
    assert out_b.shape == (2, num_nodes, num_classes)
    ref_b = jnp.stack([chebnet_reference(x, l_hat, params),
                       chebnet_reference(x2, l_hat2, params)])
    assert bool(jnp.allclose(out_b, ref_b, atol=1e-3, rtol=1e-3))

    print("KERNEL_OK")
</pallas_src>

<mosaic_0001>
module attributes {stable_mosaic.version = 11 : i64} {
  func.func @_chebnet_fused_kernel(%arg0: i32, %arg1: memref<1x32x32xf32, #tpu.memory_space<vmem>>, %arg2: memref<1x32x128xf32, #tpu.memory_space<vmem>>, %arg3: memref<3x128x128xf32, #tpu.memory_space<vmem>>, %arg4: memref<1x128xf32, #tpu.memory_space<vmem>>, %arg5: memref<3x128x128xf32, #tpu.memory_space<vmem>>, %arg6: memref<1x128xf32, #tpu.memory_space<vmem>>, %arg7: memref<1x32x128xf32, #tpu.memory_space<vmem>>) attributes {dimension_semantics = [#tpu.dimension_semantics<parallel>], iteration_bounds = array<i64: 1>, scalar_prefetch = 0 : i64, scratch_operands = 0 : i64, tpu.core_type = #tpu.core_type<tc>, window_params = [{transform_indices = @transform_0, window_bounds = array<i64: 1, 32, 32>}, {transform_indices = @transform_1, window_bounds = array<i64: 1, 32, 128>}, {pipeline_mode = #tpu.pipeline_mode<synchronous>, transform_indices = @transform_2, window_bounds = array<i64: 3, 128, 128>}, {pipeline_mode = #tpu.pipeline_mode<synchronous>, transform_indices = @transform_3, window_bounds = array<i64: 1, 128>}, {pipeline_mode = #tpu.pipeline_mode<synchronous>, transform_indices = @transform_4, window_bounds = array<i64: 3, 128, 128>}, {pipeline_mode = #tpu.pipeline_mode<synchronous>, transform_indices = @transform_5, window_bounds = array<i64: 1, 128>}, {transform_indices = @transform_6, window_bounds = array<i64: 1, 32, 128>}]} {
    %c0 = arith.constant 0 : index
    %c0_0 = arith.constant 0 : index
    %c0_1 = arith.constant 0 : index
    %0 = vector.load %arg1[%c0, %c0_0, %c0_1] : memref<1x32x32xf32, #tpu.memory_space<vmem>>, vector<1x32x32xf32>
    %1 = vector.shape_cast %0 : vector<1x32x32xf32> to vector<32x32xf32>
    %c0_2 = arith.constant 0 : index
    %c0_3 = arith.constant 0 : index
    %c0_4 = arith.constant 0 : index
    %2 = vector.load %arg3[%c0_2, %c0_3, %c0_4] : memref<3x128x128xf32, #tpu.memory_space<vmem>>, vector<3x128x128xf32>
    %c0_5 = arith.constant 0 : index
    %c0_6 = arith.constant 0 : index
    %c0_7 = arith.constant 0 : index
    %3 = vector.load %arg5[%c0_5, %c0_6, %c0_7] : memref<3x128x128xf32, #tpu.memory_space<vmem>>, vector<3x128x128xf32>
    %c0_8 = arith.constant 0 : index
    %c0_9 = arith.constant 0 : index
    %c0_10 = arith.constant 0 : index
    %4 = vector.load %arg2[%c0_8, %c0_9, %c0_10] : memref<1x32x128xf32, #tpu.memory_space<vmem>>, vector<1x32x128xf32>
    %5 = vector.shape_cast %4 : vector<1x32x128xf32> to vector<32x128xf32>
    %c0_11 = arith.constant 0 : index
    %c0_12 = arith.constant 0 : index
    %6 = vector.load %arg4[%c0_11, %c0_12] : memref<1x128xf32, #tpu.memory_space<vmem>>, vector<1x128xf32>
    %7 = vector.extract_strided_slice %2 {offsets = [0, 0, 0], sizes = [1, 128, 128], strides = [1, 1, 1]} : vector<3x128x128xf32> to vector<1x128x128xf32>
    %8 = vector.shape_cast %7 : vector<1x128x128xf32> to vector<128x128xf32>
    %cst = arith.constant dense<0.000000e+00> : vector<32x128xf32>
    %9 = tpu.matmul %5, %8, %cst {dimension_numbers = #tpu.dot_dimension_numbers<[1], [0], [0], [1], [0, 0, 1, 1], [], []>} : vector<32x128xf32>, vector<128x128xf32>, vector<32x128xf32> -> vector<32x128xf32>
    %cst_13 = arith.constant dense<0.000000e+00> : vector<32x128xf32>
    %10 = tpu.matmul %1, %5, %cst_13 {dimension_numbers = #tpu.dot_dimension_numbers<[1], [0], [0], [1], [0, 0, 1, 1], [], []>} : vector<32x32xf32>, vector<32x128xf32>, vector<32x128xf32> -> vector<32x128xf32>
    %11 = vector.extract_strided_slice %2 {offsets = [1, 0, 0], sizes = [1, 128, 128], strides = [1, 1, 1]} : vector<3x128x128xf32> to vector<1x128x128xf32>
    %12 = vector.shape_cast %11 : vector<1x128x128xf32> to vector<128x128xf32>
    %cst_14 = arith.constant dense<0.000000e+00> : vector<32x128xf32>
    %13 = tpu.matmul %10, %12, %cst_14 {dimension_numbers = #tpu.dot_dimension_numbers<[1], [0], [0], [1], [0, 0, 1, 1], [], []>} : vector<32x128xf32>, vector<128x128xf32>, vector<32x128xf32> -> vector<32x128xf32>
    %14 = arith.addf %9, %13 : vector<32x128xf32>
    %cst_15 = arith.constant dense<0.000000e+00> : vector<32x128xf32>
    %15 = tpu.matmul %1, %10, %cst_15 {dimension_numbers = #tpu.dot_dimension_numbers<[1], [0], [0], [1], [0, 0, 1, 1], [], []>} : vector<32x32xf32>, vector<32x128xf32>, vector<32x128xf32> -> vector<32x128xf32>
    %cst_16 = arith.constant 2.000000e+00 : f32
    %16 = vector.broadcast %cst_16 : f32 to vector<32x128xf32>
    %17 = arith.mulf %16, %15 : vector<32x128xf32>
    %18 = arith.subf %17, %5 : vector<32x128xf32>
    %19 = vector.extract_strided_slice %2 {offsets = [2, 0, 0], sizes = [1, 128, 128], strides = [1, 1, 1]} : vector<3x128x128xf32> to vector<1x128x128xf32>
    %20 = vector.shape_cast %19 : vector<1x128x128xf32> to vector<128x128xf32>
    %cst_17 = arith.constant dense<0.000000e+00> : vector<32x128xf32>
    %21 = tpu.matmul %18, %20, %cst_17 {dimension_numbers = #tpu.dot_dimension_numbers<[1], [0], [0], [1], [0, 0, 1, 1], [], []>} : vector<32x128xf32>, vector<128x128xf32>, vector<32x128xf32> -> vector<32x128xf32>
    %22 = arith.addf %14, %21 : vector<32x128xf32>
    %23 = vector.broadcast %6 : vector<1x128xf32> to vector<32x128xf32>
    %24 = arith.addf %22, %23 : vector<32x128xf32>
    %cst_18 = arith.constant 0.000000e+00 : f32
    %25 = vector.broadcast %cst_18 : f32 to vector<32x128xf32>
    %26 = arith.maximumf %24, %25 : vector<32x128xf32>
    %c0_19 = arith.constant 0 : index
    %c0_20 = arith.constant 0 : index
    %27 = vector.load %arg6[%c0_19, %c0_20] : memref<1x128xf32, #tpu.memory_space<vmem>>, vector<1x128xf32>
    %28 = vector.extract_strided_slice %3 {offsets = [0, 0, 0], sizes = [1, 128, 128], strides = [1, 1, 1]} : vector<3x128x128xf32> to vector<1x128x128xf32>
    %29 = vector.shape_cast %28 : vector<1x128x128xf32> to vector<128x128xf32>
    %cst_21 = arith.constant dense<0.000000e+00> : vector<32x128xf32>
    %30 = tpu.matmul %26, %29, %cst_21 {dimension_numbers = #tpu.dot_dimension_numbers<[1], [0], [0], [1], [0, 0, 1, 1], [], []>} : vector<32x128xf32>, vector<128x128xf32>, vector<32x128xf32> -> vector<32x128xf32>
    %cst_22 = arith.constant dense<0.000000e+00> : vector<32x128xf32>
    %31 = tpu.matmul %1, %26, %cst_22 {dimension_numbers = #tpu.dot_dimension_numbers<[1], [0], [0], [1], [0, 0, 1, 1], [], []>} : vector<32x32xf32>, vector<32x128xf32>, vector<32x128xf32> -> vector<32x128xf32>
    %32 = vector.extract_strided_slice %3 {offsets = [1, 0, 0], sizes = [1, 128, 128], strides = [1, 1, 1]} : vector<3x128x128xf32> to vector<1x128x128xf32>
    %33 = vector.shape_cast %32 : vector<1x128x128xf32> to vector<128x128xf32>
    %cst_23 = arith.constant dense<0.000000e+00> : vector<32x128xf32>
    %34 = tpu.matmul %31, %33, %cst_23 {dimension_numbers = #tpu.dot_dimension_numbers<[1], [0], [0], [1], [0, 0, 1, 1], [], []>} : vector<32x128xf32>, vector<128x128xf32>, vector<32x128xf32> -> vector<32x128xf32>
    %35 = arith.addf %30, %34 : vector<32x128xf32>
    %cst_24 = arith.constant dense<0.000000e+00> : vector<32x128xf32>
    %36 = tpu.matmul %1, %31, %cst_24 {dimension_numbers = #tpu.dot_dimension_numbers<[1], [0], [0], [1], [0, 0, 1, 1], [], []>} : vector<32x32xf32>, vector<32x128xf32>, vector<32x128xf32> -> vector<32x128xf32>
    %cst_25 = arith.constant 2.000000e+00 : f32
    %37 = vector.broadcast %cst_25 : f32 to vector<32x128xf32>
    %38 = arith.mulf %37, %36 : vector<32x128xf32>
    %39 = arith.subf %38, %26 : vector<32x128xf32>
    %40 = vector.extract_strided_slice %3 {offsets = [2, 0, 0], sizes = [1, 128, 128], strides = [1, 1, 1]} : vector<3x128x128xf32> to vector<1x128x128xf32>
    %41 = vector.shape_cast %40 : vector<1x128x128xf32> to vector<128x128xf32>
    %cst_26 = arith.constant dense<0.000000e+00> : vector<32x128xf32>
    %42 = tpu.matmul %39, %41, %cst_26 {dimension_numbers = #tpu.dot_dimension_numbers<[1], [0], [0], [1], [0, 0, 1, 1], [], []>} : vector<32x128xf32>, vector<128x128xf32>, vector<32x128xf32> -> vector<32x128xf32>
    %43 = arith.addf %35, %42 : vector<32x128xf32>
    %44 = vector.broadcast %27 : vector<1x128xf32> to vector<32x128xf32>
    %45 = arith.addf %43, %44 : vector<32x128xf32>
    %cst_27 = arith.constant dense<0xFF800000> : vector<32xf32>
    %46 = vector.multi_reduction <maximumf>, %45, %cst_27 [1] : vector<32x128xf32> to vector<32xf32>
    %47 = vector.shape_cast %46 : vector<32xf32> to vector<32x1xf32>
    %48 = vector.broadcast %47 : vector<32x1xf32> to vector<32x128xf32>
    %49 = arith.subf %45, %48 : vector<32x128xf32>
    %50 = math.exp %49 : vector<32x128xf32>
    %cst_28 = arith.constant dense<0.000000e+00> : vector<32xf32>
    %51 = vector.multi_reduction <add>, %50, %cst_28 [1] : vector<32x128xf32> to vector<32xf32>
    %52 = vector.shape_cast %51 : vector<32xf32> to vector<32x1xf32>
    %53 = math.log %52 : vector<32x1xf32>
    %54 = vector.broadcast %53 : vector<32x1xf32> to vector<32x128xf32>
    %55 = arith.subf %49, %54 : vector<32x128xf32>
    %c0_29 = arith.constant 0 : index
    %c0_30 = arith.constant 0 : index
    %c0_31 = arith.constant 0 : index
    %56 = vector.load %arg7[%c0_29, %c0_30, %c0_31] : memref<1x32x128xf32, #tpu.memory_space<vmem>>, vector<1x32x128xf32>
    %57 = vector.shape_cast %56 : vector<1x32x128xf32> to vector<32x128xf32>
    %58 = vector.shape_cast %55 : vector<32x128xf32> to vector<1x32x128xf32>
    tpu.vector_store %arg7[%c0_29, %c0_30, %c0_31], %58 {strides = array<i32>} : memref<1x32x128xf32, #tpu.memory_space<vmem>>, vector<1x32x128xf32>,
    return
  }
  func.func @transform_0(%arg0: i32) -> (i32, i32, i32) {
    %c0_i32 = arith.constant 0 : i32
    %c0_i32_0 = arith.constant 0 : i32
    %c0_i32_1 = arith.constant 0 : i32
    return %arg0, %c0_i32, %c0_i32_0 : i32, i32, i32
  }
  func.func @transform_1(%arg0: i32) -> (i32, i32, i32) {
    %c0_i32 = arith.constant 0 : i32
    %c0_i32_0 = arith.constant 0 : i32
    %c0_i32_1 = arith.constant 0 : i32
    return %arg0, %c0_i32, %c0_i32_0 : i32, i32, i32
  }
  func.func @transform_2(%arg0: i32) -> (i32, i32, i32) {
    %c0_i32 = arith.constant 0 : i32
    %c0_i32_0 = arith.constant 0 : i32
    %c0_i32_1 = arith.constant 0 : i32
    %c0_i32_2 = arith.constant 0 : i32
    return %c0_i32, %c0_i32_0, %c0_i32_1 : i32, i32, i32
  }
  func.func @transform_3(%arg0: i32) -> (i32, i32) {
    %c0_i32 = arith.constant 0 : i32
    %c0_i32_0 = arith.constant 0 : i32
    %c0_i32_1 = arith.constant 0 : i32
    return %c0_i32, %c0_i32_0 : i32, i32
  }
  func.func @transform_4(%arg0: i32) -> (i32, i32, i32) {
    %c0_i32 = arith.constant 0 : i32
    %c0_i32_0 = arith.constant 0 : i32
    %c0_i32_1 = arith.constant 0 : i32
    %c0_i32_2 = arith.constant 0 : i32
    return %c0_i32, %c0_i32_0, %c0_i32_1 : i32, i32, i32
  }
  func.func @transform_5(%arg0: i32) -> (i32, i32) {
    %c0_i32 = arith.constant 0 : i32
    %c0_i32_0 = arith.constant 0 : i32
    %c0_i32_1 = arith.constant 0 : i32
    return %c0_i32, %c0_i32_0 : i32, i32
  }
  func.func @transform_6(%arg0: i32) -> (i32, i32, i32) {
    %c0_i32 = arith.constant 0 : i32
    %c0_i32_0 = arith.constant 0 : i32
    %c0_i32_1 = arith.constant 0 : i32
    return %arg0, %c0_i32, %c0_i32_0 : i32, i32, i32
  }
}

</mosaic_0001>

<llo_original>
// kernel: chebnet_forward.1
$region0: #{chebnet_forward.1}
  #allocation0 [shape = 'u32[]', space=smem, size = 0x4, offset = 0x4, fixed_abs, tag = 'smem constant byte address 0x4 - core index']
  #allocation1 [shape = 'u32[144,128]{1,0:T(1,128)}', space=vmem, size = 0x12000, scoped, tag = 'internal scratch']
  %s0 = inlined_call_operand.vmem [shape: f32[1,32,32], index: 0, kind: input, shape index: {}]
  %s1 = inlined_call_operand.vmem [shape: f32[1,32,128], index: 1, kind: input, shape index: {}]
  %s2 = inlined_call_operand.vmem [shape: f32[3,128,128], index: 2, kind: input, shape index: {}]
  %s3 = inlined_call_operand.vmem [shape: f32[1,128], index: 3, kind: input, shape index: {}]
  %s4 = inlined_call_operand.vmem [shape: f32[3,128,128], index: 4, kind: input, shape index: {}]
  %s5 = inlined_call_operand.vmem [shape: f32[1,128], index: 5, kind: input, shape index: {}]
  %s6 = inlined_call_operand.vmem [shape: f32[1,32,128], index: 6, kind: output, shape index: {}]
  %s7 = sld [smem:[#allocation0]]
  $region34: #{chebnet_forward.1} parent=0
    _
  %s9 = ssub.s32 1, %s7
  %s10 = scalar_select 0, %s9, %s7
  // Predicated region
  $region2: #{chebnet_forward.1} parent=0 // pred_check
    _
  $region3: #{chebnet_forward.1} parent=0 // pred_check_branch
    %12 = sbr.rel (0) target = $region5
  $region4: #{chebnet_forward.1} parent=0 // pred_region
    _
  $region5: #{chebnet_forward.1} parent=0 // pred_fallthru
    _
  // Predicated region
  $region6: #{chebnet_forward.1} parent=0 // pred_check
    _
  $region7: #{chebnet_forward.1} parent=0 // pred_check_branch
    %14 = sbr.rel (0) target = $region9
  $region8: #{chebnet_forward.1} parent=0 // pred_region
    _
  $region9: #{chebnet_forward.1} parent=0 // pred_fallthru
    _
  // Predicated region
  $region10: #{chebnet_forward.1} parent=0 // pred_check
    _
  $region11: #{chebnet_forward.1} parent=0 // pred_check_branch
    %16 = sbr.rel (0) target = $region13
  $region12: #{chebnet_forward.1} parent=0 // pred_region
    _
  $region13: #{chebnet_forward.1} parent=0 // pred_fallthru
    _
  // Predicated region
  $region14: #{chebnet_forward.1} parent=0 // pred_check
    _
  $region15: #{chebnet_forward.1} parent=0 // pred_check_branch
    %18 = sbr.rel (0) target = $region17
  $region16: #{chebnet_forward.1} parent=0 // pred_region
    _
  $region17: #{chebnet_forward.1} parent=0 // pred_fallthru
    _
  // Predicated region
  $region18: #{chebnet_forward.1} parent=0 // pred_check
    _
  $region19: #{chebnet_forward.1} parent=0 // pred_check_branch
    %20 = sbr.rel (0) target = $region21
  $region20: #{chebnet_forward.1} parent=0 // pred_region
    _
  $region21: #{chebnet_forward.1} parent=0 // pred_fallthru
    _
  // Predicated region
  $region22: #{chebnet_forward.1} parent=0 // pred_check
    _
  $region23: #{chebnet_forward.1} parent=0 // pred_check_branch
    %22 = sbr.rel (0) target = $region25
  $region24: #{chebnet_forward.1} parent=0 // pred_region
    _
  $region25: #{chebnet_forward.1} parent=0 // pred_fallthru
    _
  %v23 = vld [vmem:[%s0] sm:$0xff]
  %v24 = vld [vmem:[%s0 + $0x8] sm:$0xff]
  %v25 = vld [vmem:[%s0 + $0x10] sm:$0xff]
  %v26 = vld [vmem:[%s0 + $0x18] sm:$0xff]
  %v27 = vld [vmem:[%s2] sm:$0xff]
  %v28 = vld [vmem:[%s2 + $0x8] sm:$0xff]
  %v29 = vld [vmem:[%s2 + $0x10] sm:$0xff]
  %v30 = vld [vmem:[%s2 + $0x18] sm:$0xff]
  %v31 = vld [vmem:[%s2 + $0x20] sm:$0xff]
  %v32 = vld [vmem:[%s2 + $0x28] sm:$0xff]
  %v33 = vld [vmem:[%s2 + $0x30] sm:$0xff]
  %v34 = vld [vmem:[%s2 + $0x38] sm:$0xff]
  %v35 = vld [vmem:[%s2 + $0x40] sm:$0xff]
  %v36 = vld [vmem:[%s2 + $0x48] sm:$0xff]
  %v37 = vld [vmem:[%s2 + $0x50] sm:$0xff]
  %v38 = vld [vmem:[%s2 + $0x58] sm:$0xff]
  %v39 = vld [vmem:[%s2 + $0x60] sm:$0xff]
  %v40 = vld [vmem:[%s2 + $0x68] sm:$0xff]
  %v41 = vld [vmem:[%s2 + $0x70] sm:$0xff]
  %v42 = vld [vmem:[%s2 + $0x78] sm:$0xff]
  %v43 = vld [vmem:[%s2 + $0x80] sm:$0xff]
  %v44 = vld [vmem:[%s2 + $0x88] sm:$0xff]
  %v45 = vld [vmem:[%s2 + $0x90] sm:$0xff]
  %v46 = vld [vmem:[%s2 + $0x98] sm:$0xff]
  %v47 = vld [vmem:[%s2 + $0xa0] sm:$0xff]
  %v48 = vld [vmem:[%s2 + $0xa8] sm:$0xff]
  %v49 = vld [vmem:[%s2 + $0xb0] sm:$0xff]
  %v50 = vld [vmem:[%s2 + $0xb8] sm:$0xff]
  %v51 = vld [vmem:[%s2 + $0xc0] sm:$0xff]
  %v52 = vld [vmem:[%s2 + $0xc8] sm:$0xff]
  %v53 = vld [vmem:[%s2 + $0xd0] sm:$0xff]
  %v54 = vld [vmem:[%s2 + $0xd8] sm:$0xff]
  %v55 = vld [vmem:[%s2 + $0xe0] sm:$0xff]
  %v56 = vld [vmem:[%s2 + $0xe8] sm:$0xff]
  %v57 = vld [vmem:[%s2 + $0xf0] sm:$0xff]
  %v58 = vld [vmem:[%s2 + $0xf8] sm:$0xff]
  %v59 = vld [vmem:[%s2 + $0x100] sm:$0xff]
  %v60 = vld [vmem:[%s2 + $0x108] sm:$0xff]
  %v61 = vld [vmem:[%s2 + $0x110] sm:$0xff]
  %v62 = vld [vmem:[%s2 + $0x118] sm:$0xff]
  %v63 = vld [vmem:[%s2 + $0x120] sm:$0xff]
  %v64 = vld [vmem:[%s2 + $0x128] sm:$0xff]
  %v65 = vld [vmem:[%s2 + $0x130] sm:$0xff]
  %v66 = vld [vmem:[%s2 + $0x138] sm:$0xff]
  %v67 = vld [vmem:[%s2 + $0x140] sm:$0xff]
  %v68 = vld [vmem:[%s2 + $0x148] sm:$0xff]
  %v69 = vld [vmem:[%s2 + $0x150] sm:$0xff]
  %v70 = vld [vmem:[%s2 + $0x158] sm:$0xff]
  %v71 = vld [vmem:[%s2 + $0x160] sm:$0xff]
  %v72 = vld [vmem:[%s2 + $0x168] sm:$0xff]
  %v73 = vld [vmem:[%s2 + $0x170] sm:$0xff]
  %v74 = vld [vmem:[%s2 + $0x178] sm:$0xff]
  %v75 = vld [vmem:[%s4] sm:$0xff]
  %v76 = vld [vmem:[%s4 + $0x8] sm:$0xff]
  %v77 = vld [vmem:[%s4 + $0x10] sm:$0xff]
  %v78 = vld [vmem:[%s4 + $0x18] sm:$0xff]
  %v79 = vld [vmem:[%s4 + $0x20] sm:$0xff]
  %v80 = vld [vmem:[%s4 + $0x28] sm:$0xff]
  %v81 = vld [vmem:[%s4 + $0x30] sm:$0xff]
  %v82 = vld [vmem:[%s4 + $0x38] sm:$0xff]
  %v83 = vld [vmem:[%s4 + $0x40] sm:$0xff]
  %v84 = vld [vmem:[%s4 + $0x48] sm:$0xff]
  %v85 = vld [vmem:[%s4 + $0x50] sm:$0xff]
  %v86 = vld [vmem:[%s4 + $0x58] sm:$0xff]
  %v87 = vld [vmem:[%s4 + $0x60] sm:$0xff]
  %v88 = vld [vmem:[%s4 + $0x68] sm:$0xff]
  %v89 = vld [vmem:[%s4 + $0x70] sm:$0xff]
  %v90 = vld [vmem:[%s4 + $0x78] sm:$0xff]
  %v91 = vld [vmem:[%s4 + $0x80] sm:$0xff]
  %v92 = vld [vmem:[%s4 + $0x88] sm:$0xff]
  %v93 = vld [vmem:[%s4 + $0x90] sm:$0xff]
  %v94 = vld [vmem:[%s4 + $0x98] sm:$0xff]
  %v95 = vld [vmem:[%s4 + $0xa0] sm:$0xff]
  %v96 = vld [vmem:[%s4 + $0xa8] sm:$0xff]
  %v97 = vld [vmem:[%s4 + $0xb0] sm:$0xff]
  %v98 = vld [vmem:[%s4 + $0xb8] sm:$0xff]
  %v99 = vld [vmem:[%s4 + $0xc0] sm:$0xff]
  %v100 = vld [vmem:[%s4 + $0xc8] sm:$0xff]
  %v101 = vld [vmem:[%s4 + $0xd0] sm:$0xff]
  %v102 = vld [vmem:[%s4 + $0xd8] sm:$0xff]
  %v103 = vld [vmem:[%s4 + $0xe0] sm:$0xff]
  %v104 = vld [vmem:[%s4 + $0xe8] sm:$0xff]
  %v105 = vld [vmem:[%s4 + $0xf0] sm:$0xff]
  %v106 = vld [vmem:[%s4 + $0xf8] sm:$0xff]
  %v107 = vld [vmem:[%s4 + $0x100] sm:$0xff]
  %v108 = vld [vmem:[%s4 + $0x108] sm:$0xff]
  %v109 = vld [vmem:[%s4 + $0x110] sm:$0xff]
  %v110 = vld [vmem:[%s4 + $0x118] sm:$0xff]
  %v111 = vld [vmem:[%s4 + $0x120] sm:$0xff]
  %v112 = vld [vmem:[%s4 + $0x128] sm:$0xff]
  %v113 = vld [vmem:[%s4 + $0x130] sm:$0xff]
  %v114 = vld [vmem:[%s4 + $0x138] sm:$0xff]
  %v115 = vld [vmem:[%s4 + $0x140] sm:$0xff]
  %v116 = vld [vmem:[%s4 + $0x148] sm:$0xff]
  %v117 = vld [vmem:[%s4 + $0x150] sm:$0xff]
  %v118 = vld [vmem:[%s4 + $0x158] sm:$0xff]
  %v119 = vld [vmem:[%s4 + $0x160] sm:$0xff]
  %v120 = vld [vmem:[%s4 + $0x168] sm:$0xff]
  %v121 = vld [vmem:[%s4 + $0x170] sm:$0xff]
  %v122 = vld [vmem:[%s4 + $0x178] sm:$0xff]
  %v123 = vld [vmem:[%s1] sm:$0xff]
  %v124 = vld [vmem:[%s1 + $0x8] sm:$0xff]
  %v125 = vld [vmem:[%s1 + $0x10] sm:$0xff]
  %v126 = vld [vmem:[%s1 + $0x18] sm:$0xff]
  %v127 = vld [vmem:[%s3] sm:$0x1]
  %vm128 = vcmask 261120
  %v130 = vsel %vm128, %v23, 0
  %v133 = vsel %vm128, %v24, 0
  %v136 = vsel %vm128, %v25, 0
  %v139 = vsel %vm128, %v26, 0
  %141 = vmatprep.subr.mxu0 0.0
  %142 = vmatpush1.msra.mxu0 %v123
  %143 = vmatprep.subr.mxu0 0.0
  %144 = vmatpush1.msra.mxu0 %v124
  %145 = vmatprep.subr.mxu0 0.0
  %146 = vmatpush1.msra.mxu0 %v125
  %147 = vmatprep.subr.mxu0 0.0
  %148 = vmatpush1.msra.mxu0 %v126
  %149 = vmatprep.subr.mxu0 0.0
  %150 = vmatpush1.msra.mxu0 0.0
  %151 = vmatprep.subr.mxu0 0.0
  %152 = vmatpush1.msra.mxu0 0.0
  %153 = vmatprep.subr.mxu0 0.0
  %154 = vmatpush1.msra.mxu0 0.0
  %155 = vmatprep.subr.mxu0 0.0
  %156 = vmatpush1.msra.mxu0 0.0
  %157 = vmatprep.subr.mxu0 0.0
  %158 = vmatpush1.msra.mxu0 0.0
  %159 = vmatprep.subr.mxu0 0.0
  %160 = vmatpush1.msra.mxu0 0.0
  %161 = vmatprep.subr.mxu0 0.0
  %162 = vmatpush1.msra.mxu0 0.0
  %163 = vmatprep.subr.mxu0 0.0
  %164 = vmatpush1.msra.mxu0 0.0
  %165 = vmatprep.subr.mxu0 0.0
  %166 = vmatpush1.msra.mxu0 0.0
  %167 = vmatprep.subr.mxu0 0.0
  %168 = vmatpush1.msra.mxu0 0.0
  %169 = vmatprep.subr.mxu0 0.0
  %170 = vmatpush1.msra.mxu0 0.0
  %171 = vmatprep.subr.mxu0 0.0
  %172 = vmatpush1.msra.mxu0 0.0
  %173 = vmatprep.subr.mxu0 0.0
  %174 = vmatpush1.msra.mxu0 0.0
  %175 = vmatprep.subr.mxu0 0.0
  %176 = vmatpush1.msra.mxu0 0.0
  %177 = vmatprep.subr.mxu0 0.0
  %178 = vmatpush1.msra.mxu0 0.0
  %179 = vmatprep.subr.mxu0 0.0
  %180 = vmatpush1.msra.mxu0 0.0
  %181 = vmatprep.subr.mxu0 0.0
  %182 = vmatpush1.msra.mxu0 0.0
  %183 = vmatprep.subr.mxu0 0.0
  %184 = vmatpush1.msra.mxu0 0.0
  %185 = vmatprep.subr.mxu0 0.0
  %186 = vmatpush1.msra.mxu0 0.0
  %187 = vmatprep.subr.mxu0 0.0
  %188 = vmatpush1.msra.mxu0 0.0
  %189 = vmatprep.subr.mxu0 0.0
  %190 = vmatpush1.msra.mxu0 0.0
  %191 = vmatprep.subr.mxu0 0.0
  %192 = vmatpush1.msra.mxu0 0.0
  %193 = vmatprep.subr.mxu0 0.0
  %194 = vmatpush1.msra.mxu0 0.0
  %195 = vmatprep.subr.mxu0 0.0
  %196 = vmatpush1.msra.mxu0 0.0
  %197 = vmatprep.subr.mxu0 0.0
  %198 = vmatpush1.msra.mxu0 0.0
  %199 = vmatprep.subr.mxu0 0.0
  %200 = vmatpush1.msra.mxu0 0.0
  %201 = vmatprep.subr.mxu0 0.0
  %202 = vmatpush1.msra.mxu0 0.0
  %203 = vmatprep.subr.mxu0 0.0
  %204 = vmatpush1.msra.mxu0 0.0
  %205 = vmatprep.mubr.f32.mxu0 0.0
  %206 = vmatmul.mubr.f32.gmra.mrb[0].mxu0 %v130
  %v207 = vpop.f32.mrb[0].mxu0
  %v208 = vadd.f32 0.0, %v207
  %v209 = vpop.f32.mrb[0].mxu0
  %210 = vmatprep.mubr.f32.mxu0 0.0
  %211 = vmatmul.mubr.f32.gmra.mrb[0].mxu0 %v133
  %v212 = vpop.f32.mrb[0].mxu0
  %v213 = vadd.f32 0.0, %v212
  %v214 = vpop.f32.mrb[0].mxu0
  %215 = vmatprep.mubr.f32.mxu0 0.0
  %216 = vmatmul.mubr.f32.gmra.mrb[0].mxu0 %v136
  %v217 = vpop.f32.mrb[0].mxu0
  %v218 = vadd.f32 0.0, %v217
  %v219 = vpop.f32.mrb[0].mxu0
  %220 = vmatprep.mubr.f32.mxu0 0.0
  %221 = vmatmul.mubr.f32.gmra.mrb[0].mxu0 %v139
  %v222 = vpop.f32.mrb[0].mxu0
  %v223 = vadd.f32 0.0, %v222
  %v224 = vpop.f32.mrb[0].mxu0
  %225 = vdwg.mxu0
  %226 = vmatprep.subr.mxu0 0.0
  %227 = vmatpush1.msra.mxu0 %v43
  %228 = vmatprep.subr.mxu0 0.0
  %229 = vmatpush1.msra.mxu0 %v44
  %230 = vmatprep.subr.mxu0 0.0
  %231 = vmatpush1.msra.mxu0 %v45
  %232 = vmatprep.subr.mxu0 0.0
  %233 = vmatpush1.msra.mxu0 %v46
  %234 = vmatprep.subr.mxu0 0.0
  %235 = vmatpush1.msra.mxu0 %v47
  %236 = vmatprep.subr.mxu0 0.0
  %237 = vmatpush1.msra.mxu0 %v48
  %238 = vmatprep.subr.mxu0 0.0
  %239 = vmatpush1.msra.mxu0 %v49
  %240 = vmatprep.subr.mxu0 0.0
  %241 = vmatpush1.msra.mxu0 %v50
  %242 = vmatprep.subr.mxu0 0.0
  %243 = vmatpush1.msra.mxu0 %v51
  %244 = vmatprep.subr.mxu0 0.0
  %245 = vmatpush1.msra.mxu0 %v52
  %246 = vmatprep.subr.mxu0 0.0
  %247 = vmatpush1.msra.mxu0 %v53
  %248 = vmatprep.subr.mxu0 0.0
  %249 = vmatpush1.msra.mxu0 %v54
  %250 = vmatprep.subr.mxu0 0.0
  %251 = vmatpush1.msra.mxu0 %v55
  %252 = vmatprep.subr.mxu0 0.0
  %253 = vmatpush1.msra.mxu0 %v56
  %254 = vmatprep.subr.mxu0 0.0
  %255 = vmatpush1.msra.mxu0 %v57
  %256 = vmatprep.subr.mxu0 0.0
  %257 = vmatpush1.msra.mxu0 %v58
  %258 = vmatprep.subr.mxu0 0.0
  %259 = vmatpush1.msra.mxu0 0.0
  %260 = vmatprep.subr.mxu0 0.0
  %261 = vmatpush1.msra.mxu0 0.0
  %262 = vmatprep.subr.mxu0 0.0
  %263 = vmatpush1.msra.mxu0 0.0
  %264 = vmatprep.subr.mxu0 0.0
  %265 = vmatpush1.msra.mxu0 0.0
  %266 = vmatprep.subr.mxu0 0.0
  %267 = vmatpush1.msra.mxu0 0.0
  %268 = vmatprep.subr.mxu0 0.0
  %269 = vmatpush1.msra.mxu0 0.0
  %270 = vmatprep.subr.mxu0 0.0
  %271 = vmatpush1.msra.mxu0 0.0
  %272 = vmatprep.subr.mxu0 0.0
  %273 = vmatpush1.msra.mxu0 0.0
  %274 = vmatprep.subr.mxu0 0.0
  %275 = vmatpush1.msra.mxu0 0.0
  %276 = vmatprep.subr.mxu0 0.0
  %277 = vmatpush1.msra.mxu0 0.0
  %278 = vmatprep.subr.mxu0 0.0
  %279 = vmatpush1.msra.mxu0 0.0
  %280 = vmatprep.subr.mxu0 0.0
  %281 = vmatpush1.msra.mxu0 0.0
  %282 = vmatprep.subr.mxu0 0.0
  %283 = vmatpush1.msra.mxu0 0.0
  %284 = vmatprep.subr.mxu0 0.0
  %285 = vmatpush1.msra.mxu0 0.0
  %286 = vmatprep.subr.mxu0 0.0
  %287 = vmatpush1.msra.mxu0 0.0
  %288 = vmatprep.subr.mxu0 0.0
  %289 = vmatpush1.msra.mxu0 0.0
  %290 = vmatprep.mubr.f32.mxu0 0.0
  %291 = vmatmul.mubr.f32.gmra.mrb[0].mxu0 %v208
  %v292 = vpop.f32.mrb[0].mxu0
  %v293 = vadd.f32 0.0, %v292
  %v294 = vpop.f32.mrb[0].mxu0
  %295 = vmatprep.mubr.f32.mxu0 0.0
  %296 = vmatmul.mubr.f32.gmra.mrb[0].mxu0 %v213
  %v297 = vpop.f32.mrb[0].mxu0
  %v298 = vadd.f32 0.0, %v297
  %v299 = vpop.f32.mrb[0].mxu0
  %300 = vmatprep.mubr.f32.mxu0 0.0
  %301 = vmatmul.mubr.f32.gmra.mrb[0].mxu0 %v218
  %v302 = vpop.f32.mrb[0].mxu0
  %v303 = vadd.f32 0.0, %v302
  %v304 = vpop.f32.mrb[0].mxu0
  %305 = vmatprep.mubr.f32.mxu0 0.0
  %306 = vmatmul.mubr.f32.gmra.mrb[0].mxu0 %v223
  %v307 = vpop.f32.mrb[0].mxu0
  %v308 = vadd.f32 0.0, %v307
  %v309 = vpop.f32.mrb[0].mxu0
  %310 = vdwg.mxu0
  %311 = vmatprep.subr.mxu0 0.0
  %312 = vmatpush1.msra.mxu0 %v27
  %313 = vmatprep.subr.mxu0 0.0
  %314 = vmatpush1.msra.mxu0 %v28
  %315 = vmatprep.subr.mxu0 0.0
  %316 = vmatpush1.msra.mxu0 %v29
  %317 = vmatprep.subr.mxu0 0.0
  %318 = vmatpush1.msra.mxu0 %v30
  %319 = vmatprep.subr.mxu0 0.0
  %320 = vmatpush1.msra.mxu0 %v31
  %321 = vmatprep.subr.mxu0 0.0
  %322 = vmatpush1.msra.mxu0 %v32
  %323 = vmatprep.subr.mxu0 0.0
  %324 = vmatpush1.msra.mxu0 %v33
  %325 = vmatprep.subr.mxu0 0.0
  %326 = vmatpush1.msra.mxu0 %v34
  %327 = vmatprep.subr.mxu0 0.0
  %328 = vmatpush1.msra.mxu0 %v35
  %329 = vmatprep.subr.mxu0 0.0
  %330 = vmatpush1.msra.mxu0 %v36
  %331 = vmatprep.subr.mxu0 0.0
  %332 = vmatpush1.msra.mxu0 %v37
  %333 = vmatprep.subr.mxu0 0.0
  %334 = vmatpush1.msra.mxu0 %v38
  %335 = vmatprep.subr.mxu0 0.0
  %336 = vmatpush1.msra.mxu0 %v39
  %337 = vmatprep.subr.mxu0 0.0
  %338 = vmatpush1.msra.mxu0 %v40
  %339 = vmatprep.subr.mxu0 0.0
  %340 = vmatpush1.msra.mxu0 %v41
  %341 = vmatprep.subr.mxu0 0.0
  %342 = vmatpush1.msra.mxu0 %v42
  %343 = vmatprep.subr.mxu0 0.0
  %344 = vmatpush1.msra.mxu0 0.0
  %345 = vmatprep.subr.mxu0 0.0
  %346 = vmatpush1.msra.mxu0 0.0
  %347 = vmatprep.subr.mxu0 0.0
  %348 = vmatpush1.msra.mxu0 0.0
  %349 = vmatprep.subr.mxu0 0.0
  %350 = vmatpush1.msra.mxu0 0.0
  %351 = vmatprep.subr.mxu0 0.0
  %352 = vmatpush1.msra.mxu0 0.0
  %353 = vmatprep.subr.mxu0 0.0
  %354 = vmatpush1.msra.mxu0 0.0
  %355 = vmatprep.subr.mxu0 0.0
  %356 = vmatpush1.msra.mxu0 0.0
  %357 = vmatprep.subr.mxu0 0.0
  %358 = vmatpush1.msra.mxu0 0.0
  %359 = vmatprep.subr.mxu0 0.0
  %360 = vmatpush1.msra.mxu0 0.0
  %361 = vmatprep.subr.mxu0 0.0
  %362 = vmatpush1.msra.mxu0 0.0
  %363 = vmatprep.subr.mxu0 0.0
  %364 = vmatpush1.msra.mxu0 0.0
  %365 = vmatprep.subr.mxu0 0.0
  %366 = vmatpush1.msra.mxu0 0.0
  %367 = vmatprep.subr.mxu0 0.0
  %368 = vmatpush1.msra.mxu0 0.0
  %369 = vmatprep.subr.mxu0 0.0
  %370 = vmatpush1.msra.mxu0 0.0
  %371 = vmatprep.subr.mxu0 0.0
  %372 = vmatpush1.msra.mxu0 0.0
  %373 = vmatprep.subr.mxu0 0.0
  %374 = vmatpush1.msra.mxu0 0.0
  %375 = vmatprep.mubr.f32.mxu0 0.0
  %376 = vmatmul.mubr.f32.gmra.mrb[0].mxu0 %v123
  %v377 = vpop.f32.mrb[0].mxu0
  %v378 = vadd.f32 %v293, %v377
  %v379 = vpop.f32.mrb[0].mxu0
  %380 = vmatprep.mubr.f32.mxu0 0.0
  %381 = vmatmul.mubr.f32.gmra.mrb[0].mxu0 %v124
  %v382 = vpop.f32.mrb[0].mxu0
  %v383 = vadd.f32 %v298, %v382
  %v384 = vpop.f32.mrb[0].mxu0
  %385 = vmatprep.mubr.f32.mxu0 0.0
  %386 = vmatmul.mubr.f32.gmra.mrb[0].mxu0 %v125
  %v387 = vpop.f32.mrb[0].mxu0
  %v388 = vadd.f32 %v303, %v387
  %v389 = vpop.f32.mrb[0].mxu0
  %390 = vmatprep.mubr.f32.mxu0 0.0
  %391 = vmatmul.mubr.f32.gmra.mrb[0].mxu0 %v126
  %v392 = vpop.f32.mrb[0].mxu0
  %v393 = vadd.f32 %v308, %v392
  %v394 = vpop.f32.mrb[0].mxu0
  %395 = vdwg.mxu0
  %396 = vmatprep.subr.mxu0 0.0
  %397 = vmatpush1.msra.mxu0 %v208
  %398 = vmatprep.subr.mxu0 0.0
  %399 = vmatpush1.msra.mxu0 %v213
  %400 = vmatprep.subr.mxu0 0.0
  %401 = vmatpush1.msra.mxu0 %v218
  %402 = vmatprep.subr.mxu0 0.0
  %403 = vmatpush1.msra.mxu0 %v223
  %404 = vmatprep.subr.mxu0 0.0
  %405 = vmatpush1.msra.mxu0 0.0
  %406 = vmatprep.subr.mxu0 0.0
  %407 = vmatpush1.msra.mxu0 0.0
  %408 = vmatprep.subr.mxu0 0.0
  %409 = vmatpush1.msra.mxu0 0.0
  %410 = vmatprep.subr.mxu0 0.0
  %411 = vmatpush1.msra.mxu0 0.0
  %412 = vmatprep.subr.mxu0 0.0
  %413 = vmatpush1.msra.mxu0 0.0
  %414 = vmatprep.subr.mxu0 0.0
  %415 = vmatpush1.msra.mxu0 0.0
  %416 = vmatprep.subr.mxu0 0.0
  %417 = vmatpush1.msra.mxu0 0.0
  %418 = vmatprep.subr.mxu0 0.0
  %419 = vmatpush1.msra.mxu0 0.0
  %420 = vmatprep.subr.mxu0 0.0
  %421 = vmatpush1.msra.mxu0 0.0
  %422 = vmatprep.subr.mxu0 0.0
  %423 = vmatpush1.msra.mxu0 0.0
  %424 = vmatprep.subr.mxu0 0.0
  %425 = vmatpush1.msra.mxu0 0.0
  %426 = vmatprep.subr.mxu0 0.0
  %427 = vmatpush1.msra.mxu0 0.0
  %428 = vmatprep.subr.mxu0 0.0
  %429 = vmatpush1.msra.mxu0 0.0
  %430 = vmatprep.subr.mxu0 0.0
  %431 = vmatpush1.msra.mxu0 0.0
  %432 = vmatprep.subr.mxu0 0.0
  %433 = vmatpush1.msra.mxu0 0.0
  %434 = vmatprep.subr.mxu0 0.0
  %435 = vmatpush1.msra.mxu0 0.0
  %436 = vmatprep.subr.mxu0 0.0
  %437 = vmatpush1.msra.mxu0 0.0
  %438 = vmatprep.subr.mxu0 0.0
  %439 = vmatpush1.msra.mxu0 0.0
  %440 = vmatprep.subr.mxu0 0.0
  %441 = vmatpush1.msra.mxu0 0.0
  %442 = vmatprep.subr.mxu0 0.0
  %443 = vmatpush1.msra.mxu0 0.0
  %444 = vmatprep.subr.mxu0 0.0
  %445 = vmatpush1.msra.mxu0 0.0
  %446 = vmatprep.subr.mxu0 0.0
  %447 = vmatpush1.msra.mxu0 0.0
  %448 = vmatprep.subr.mxu0 0.0
  %449 = vmatpush1.msra.mxu0 0.0
  %450 = vmatprep.subr.mxu0 0.0
  %451 = vmatpush1.msra.mxu0 0.0
  %452 = vmatprep.subr.mxu0 0.0
  %453 = vmatpush1.msra.mxu0 0.0
  %454 = vmatprep.subr.mxu0 0.0
  %455 = vmatpush1.msra.mxu0 0.0
  %456 = vmatprep.subr.mxu0 0.0
  %457 = vmatpush1.msra.mxu0 0.0
  %458 = vmatprep.subr.mxu0 0.0
  %459 = vmatpush1.msra.mxu0 0.0
  %460 = vmatprep.mubr.f32.mxu0 0.0
  %461 = vmatmul.mubr.f32.gmra.mrb[0].mxu0 %v130
  %v462 = vpop.f32.mrb[0].mxu0
  %v463 = vadd.f32 0.0, %v462
  %v464 = vpop.f32.mrb[0].mxu0
  %465 = vmatprep.mubr.f32.mxu0 0.0
  %466 = vmatmul.mubr.f32.gmra.mrb[0].mxu0 %v133
  %v467 = vpop.f32.mrb[0].mxu0
  %v468 = vadd.f32 0.0, %v467
  %v469 = vpop.f32.mrb[0].mxu0
  %470 = vmatprep.mubr.f32.mxu0 0.0
  %471 = vmatmul.mubr.f32.gmra.mrb[0].mxu0 %v136
  %v472 = vpop.f32.mrb[0].mxu0
  %v473 = vadd.f32 0.0, %v472
  %v474 = vpop.f32.mrb[0].mxu0
  %475 = vmatprep.mubr.f32.mxu0 0.0
  %476 = vmatmul.mubr.f32.gmra.mrb[0].mxu0 %v139
  %v477 = vpop.f32.mrb[0].mxu0
  %v478 = vadd.f32 0.0, %v477
  %v479 = vpop.f32.mrb[0].mxu0
  %480 = vdwg.mxu0
  %v481 = vmul.f32 %v463, 2.0
  %v482 = vmul.f32 %v468, 2.0
  %v483 = vmul.f32 %v473, 2.0
  %v484 = vmul.f32 %v478, 2.0
  %v485 = vsub.f32 %v481, %v123
  %v486 = vsub.f32 %v482, %v124
  %v487 = vsub.f32 %v483, %v125
  %v488 = vsub.f32 %v484, %v126
  %489 = vmatprep.subr.mxu0 0.0
  %490 = vmatpush1.msra.mxu0 %v59
  %491 = vmatprep.subr.mxu0 0.0
  %492 = vmatpush1.msra.mxu0 %v60
  %493 = vmatprep.subr.mxu0 0.0
  %494 = vmatpush1.msra.mxu0 %v61
  %495 = vmatprep.subr.mxu0 0.0
  %496 = vmatpush1.msra.mxu0 %v62
  %497 = vmatprep.subr.mxu0 0.0
  %498 = vmatpush1.msra.mxu0 %v63
  %499 = vmatprep.subr.mxu0 0.0
  %500 = vmatpush1.msra.mxu0 %v64
  %501 = vmatprep.subr.mxu0 0.0
  %502 = vmatpush1.msra.mxu0 %v65
  %503 = vmatprep.subr.mxu0 0.0
  %504 = vmatpush1.msra.mxu0 %v66
  %505 = vmatprep.subr.mxu0 0.0
  %506 = vmatpush1.msra.mxu0 %v67
  %507 = vmatprep.subr.mxu0 0.0
  %508 = vmatpush1.msra.mxu0 %v68
  %509 = vmatprep.subr.mxu0 0.0
  %510 = vmatpush1.msra.mxu0 %v69
  %511 = vmatprep.subr.mxu0 0.0
  %512 = vmatpush1.msra.mxu0 %v70
  %513 = vmatprep.subr.mxu0 0.0
  %514 = vmatpush1.msra.mxu0 %v71
  %515 = vmatprep.subr.mxu0 0.0
  %516 = vmatpush1.msra.mxu0 %v72
  %517 = vmatprep.subr.mxu0 0.0
  %518 = vmatpush1.msra.mxu0 %v73
  %519 = vmatprep.subr.mxu0 0.0
  %520 = vmatpush1.msra.mxu0 %v74
  %521 = vmatprep.subr.mxu0 0.0
  %522 = vmatpush1.msra.mxu0 0.0
  %523 = vmatprep.subr.mxu0 0.0
  %524 = vmatpush1.msra.mxu0 0.0
  %525 = vmatprep.subr.mxu0 0.0
  %526 = vmatpush1.msra.mxu0 0.0
  %527 = vmatprep.subr.mxu0 0.0
  %528 = vmatpush1.msra.mxu0 0.0
  %529 = vmatprep.subr.mxu0 0.0
  %530 = vmatpush1.msra.mxu0 0.0
  %531 = vmatprep.subr.mxu0 0.0
  %532 = vmatpush1.msra.mxu0 0.0
  %533 = vmatprep.subr.mxu0 0.0
  %534 = vmatpush1.msra.mxu0 0.0
  %535 = vmatprep.subr.mxu0 0.0
  %536 = vmatpush1.msra.mxu0 0.0
  %537 = vmatprep.subr.mxu0 0.0
  %538 = vmatpush1.msra.mxu0 0.0
  %539 = vmatprep.subr.mxu0 0.0
  %540 = vmatpush1.msra.mxu0 0.0
  %541 = vmatprep.subr.mxu0 0.0
  %542 = vmatpush1.msra.mxu0 0.0
  %543 = vmatprep.subr.mxu0 0.0
  %544 = vmatpush1.msra.mxu0 0.0
  %545 = vmatprep.subr.mxu0 0.0
  %546 = vmatpush1.msra.mxu0 0.0
  %547 = vmatprep.subr.mxu0 0.0
  %548 = vmatpush1.msra.mxu0 0.0
  %549 = vmatprep.subr.mxu0 0.0
  %550 = vmatpush1.msra.mxu0 0.0
  %551 = vmatprep.subr.mxu0 0.0
  %552 = vmatpush1.msra.mxu0 0.0
  %553 = vmatprep.mubr.f32.mxu0 0.0
  %554 = vmatmul.mubr.f32.gmra.mrb[0].mxu0 %v485
  %v555 = vpop.f32.mrb[0].mxu0
  %v556 = vadd.f32 0.0, %v555
  %v557 = vpop.f32.mrb[0].mxu0
  %558 = vmatprep.mubr.f32.mxu0 0.0
  %559 = vmatmul.mubr.f32.gmra.mrb[0].mxu0 %v486
  %v560 = vpop.f32.mrb[0].mxu0
  %v561 = vadd.f32 0.0, %v560
  %v562 = vpop.f32.mrb[0].mxu0
  %563 = vmatprep.mubr.f32.mxu0 0.0
  %564 = vmatmul.mubr.f32.gmra.mrb[0].mxu0 %v487
  %v565 = vpop.f32.mrb[0].mxu0
  %v566 = vadd.f32 0.0, %v565
  %v567 = vpop.f32.mrb[0].mxu0
  %568 = vmatprep.mubr.f32.mxu0 0.0
  %569 = vmatmul.mubr.f32.gmra.mrb[0].mxu0 %v488
  %v570 = vpop.f32.mrb[0].mxu0
  %v571 = vadd.f32 0.0, %v570
  %v572 = vpop.f32.mrb[0].mxu0
  %573 = vdwg.mxu0
  %v574 = vadd.f32 %v378, %v556
  %v575 = vadd.f32 %v383, %v561
  %v576 = vadd.f32 %v388, %v566
  %v577 = vadd.f32 %v393, %v571
  %v579 = vlaneseq
  %v580 = vshrl.u32 %v579, 7
  %v581 = vsub.s32 0, %v580
  %v582 = vrot.slane %v127, %v581
  %v584 = vadd.f32 %v574, %v582
  %v585 = vadd.f32 %v575, %v582
  %v586 = vadd.f32 %v576, %v582
  %v587 = vadd.f32 %v577, %v582
  %v588 = vmax.f32 %v584, 0.0
  %v589 = vmax.f32 %v585, 0.0
  %v590 = vmax.f32 %v586, 0.0
  %v591 = vmax.f32 %v587, 0.0
  %v592 = vld [vmem:[%s5] sm:$0x1]
  %593 = vmatprep.subr.mxu0 0.0
  %594 = vmatpush1.msra.mxu0 %v588
  %595 = vmatprep.subr.mxu0 0.0
  %596 = vmatpush1.msra.mxu0 %v589
  %597 = vmatprep.subr.mxu0 0.0
  %598 = vmatpush1.msra.mxu0 %v590
  %599 = vmatprep.subr.mxu0 0.0
  %600 = vmatpush1.msra.mxu0 %v591
  %601 = vmatprep.subr.mxu0 0.0
  %602 = vmatpush1.msra.mxu0 0.0
  %603 = vmatprep.subr.mxu0 0.0
  %604 = vmatpush1.msra.mxu0 0.0
  %605 = vmatprep.subr.mxu0 0.0
  %606 = vmatpush1.msra.mxu0 0.0
  %607 = vmatprep.subr.mxu0 0.0
  %608 = vmatpush1.msra.mxu0 0.0
  %609 = vmatprep.subr.mxu0 0.0
  %610 = vmatpush1.msra.mxu0 0.0
  %611 = vmatprep.subr.mxu0 0.0
  %612 = vmatpush1.msra.mxu0 0.0
  %613 = vmatprep.subr.mxu0 0.0
  %614 = vmatpush1.msra.mxu0 0.0
  %615 = vmatprep.subr.mxu0 0.0
  %616 = vmatpush1.msra.mxu0 0.0
  %617 = vmatprep.subr.mxu0 0.0
  %618 = vmatpush1.msra.mxu0 0.0
  %619 = vmatprep.subr.mxu0 0.0
  %620 = vmatpush1.msra.mxu0 0.0
  %621 = vmatprep.subr.mxu0 0.0
  %622 = vmatpush1.msra.mxu0 0.0
  %623 = vmatprep.subr.mxu0 0.0
  %624 = vmatpush1.msra.mxu0 0.0
  %625 = vmatprep.subr.mxu0 0.0
  %626 = vmatpush1.msra.mxu0 0.0
  %627 = vmatprep.subr.mxu0 0.0
  %628 = vmatpush1.msra.mxu0 0.0
  %629 = vmatprep.subr.mxu0 0.0
  %630 = vmatpush1.msra.mxu0 0.0
  %631 = vmatprep.subr.mxu0 0.0
  %632 = vmatpush1.msra.mxu0 0.0
  %633 = vmatprep.subr.mxu0 0.0
  %634 = vmatpush1.msra.mxu0 0.0
  %635 = vmatprep.subr.mxu0 0.0
  %636 = vmatpush1.msra.mxu0 0.0
  %637 = vmatprep.subr.mxu0 0.0
  %638 = vmatpush1.msra.mxu0 0.0
  %639 = vmatprep.subr.mxu0 0.0
  %640 = vmatpush1.msra.mxu0 0.0
  %641 = vmatprep.subr.mxu0 0.0
  %642 = vmatpush1.msra.mxu0 0.0
  %643 = vmatprep.subr.mxu0 0.0
  %644 = vmatpush1.msra.mxu0 0.0
  %645 = vmatprep.subr.mxu0 0.0
  %646 = vmatpush1.msra.mxu0 0.0
  %647 = vmatprep.subr.mxu0 0.0
  %648 = vmatpush1.msra.mxu0 0.0
  %649 = vmatprep.subr.mxu0 0.0
  %650 = vmatpush1.msra.mxu0 0.0
  %651 = vmatprep.subr.mxu0 0.0
  %652 = vmatpush1.msra.mxu0 0.0
  %653 = vmatprep.subr.mxu0 0.0
  %654 = vmatpush1.msra.mxu0 0.0
  %655 = vmatprep.subr.mxu0 0.0
  %656 = vmatpush1.msra.mxu0 0.0
  %657 = vmatprep.mubr.f32.mxu0 0.0
  %658 = vmatmul.mubr.f32.gmra.mrb[0].mxu0 %v130
  %v659 = vpop.f32.mrb[0].mxu0
  %v660 = vadd.f32 0.0, %v659
  %v661 = vpop.f32.mrb[0].mxu0
  %662 = vmatprep.mubr.f32.mxu0 0.0
  %663 = vmatmul.mubr.f32.gmra.mrb[0].mxu0 %v133
  %v664 = vpop.f32.mrb[0].mxu0
  %v665 = vadd.f32 0.0, %v664
  %v666 = vpop.f32.mrb[0].mxu0
  %667 = vmatprep.mubr.f32.mxu0 0.0
  %668 = vmatmul.mubr.f32.gmra.mrb[0].mxu0 %v136
  %v669 = vpop.f32.mrb[0].mxu0
  %v670 = vadd.f32 0.0, %v669
  %v671 = vpop.f32.mrb[0].mxu0
  %672 = vmatprep.mubr.f32.mxu0 0.0
  %673 = vmatmul.mubr.f32.gmra.mrb[0].mxu0 %v139
  %v674 = vpop.f32.mrb[0].mxu0
  %v675 = vadd.f32 0.0, %v674
  %v676 = vpop.f32.mrb[0].mxu0
  %677 = vdwg.mxu0
  %678 = vmatprep.subr.mxu0 0.0
  %679 = vmatpush1.msra.mxu0 %v91
  %680 = vmatprep.subr.mxu0 0.0
  %681 = vmatpush1.msra.mxu0 %v92
  %682 = vmatprep.subr.mxu0 0.0
  %683 = vmatpush1.msra.mxu0 %v93
  %684 = vmatprep.subr.mxu0 0.0
  %685 = vmatpush1.msra.mxu0 %v94
  %686 = vmatprep.subr.mxu0 0.0
  %687 = vmatpush1.msra.mxu0 %v95
  %688 = vmatprep.subr.mxu0 0.0
  %689 = vmatpush1.msra.mxu0 %v96
  %690 = vmatprep.subr.mxu0 0.0
  %691 = vmatpush1.msra.mxu0 %v97
  %692 = vmatprep.subr.mxu0 0.0
  %693 = vmatpush1.msra.mxu0 %v98
  %694 = vmatprep.subr.mxu0 0.0
  %695 = vmatpush1.msra.mxu0 %v99
  %696 = vmatprep.subr.mxu0 0.0
  %697 = vmatpush1.msra.mxu0 %v100
  %698 = vmatprep.subr.mxu0 0.0
  %699 = vmatpush1.msra.mxu0 %v101
  %700 = vmatprep.subr.mxu0 0.0
  %701 = vmatpush1.msra.mxu0 %v102
  %702 = vmatprep.subr.mxu0 0.0
  %703 = vmatpush1.msra.mxu0 %v103
  %704 = vmatprep.subr.mxu0 0.0
  %705 = vmatpush1.msra.mxu0 %v104
  %706 = vmatprep.subr.mxu0 0.0
  %707 = vmatpush1.msra.mxu0 %v105
  %708 = vmatprep.subr.mxu0 0.0
  %709 = vmatpush1.msra.mxu0 %v106
  %710 = vmatprep.subr.mxu0 0.0
  %711 = vmatpush1.msra.mxu0 0.0
  %712 = vmatprep.subr.mxu0 0.0
  %713 = vmatpush1.msra.mxu0 0.0
  %714 = vmatprep.subr.mxu0 0.0
  %715 = vmatpush1.msra.mxu0 0.0
  %716 = vmatprep.subr.mxu0 0.0
  %717 = vmatpush1.msra.mxu0 0.0
  %718 = vmatprep.subr.mxu0 0.0
  %719 = vmatpush1.msra.mxu0 0.0
  %720 = vmatprep.subr.mxu0 0.0
  %721 = vmatpush1.msra.mxu0 0.0
  %722 = vmatprep.subr.mxu0 0.0
  %723 = vmatpush1.msra.mxu0 0.0
  %724 = vmatprep.subr.mxu0 0.0
  %725 = vmatpush1.msra.mxu0 0.0
  %726 = vmatprep.subr.mxu0 0.0
  %727 = vmatpush1.msra.mxu0 0.0
  %728 = vmatprep.subr.mxu0 0.0
  %729 = vmatpush1.msra.mxu0 0.0
  %730 = vmatprep.subr.mxu0 0.0
  %731 = vmatpush1.msra.mxu0 0.0
  %732 = vmatprep.subr.mxu0 0.0
  %733 = vmatpush1.msra.mxu0 0.0
  %734 = vmatprep.subr.mxu0 0.0
  %735 = vmatpush1.msra.mxu0 0.0
  %736 = vmatprep.subr.mxu0 0.0
  %737 = vmatpush1.msra.mxu0 0.0
  %738 = vmatprep.subr.mxu0 0.0
  %739 = vmatpush1.msra.mxu0 0.0
  %740 = vmatprep.subr.mxu0 0.0
  %741 = vmatpush1.msra.mxu0 0.0
  %742 = vmatprep.mubr.f32.mxu0 0.0
  %743 = vmatmul.mubr.f32.gmra.mrb[0].mxu0 %v660
  %v744 = vpop.f32.mrb[0].mxu0
  %v745 = vadd.f32 0.0, %v744
  %v746 = vpop.f32.mrb[0].mxu0
  %747 = vmatprep.mubr.f32.mxu0 0.0
  %748 = vmatmul.mubr.f32.gmra.mrb[0].mxu0 %v665
  %v749 = vpop.f32.mrb[0].mxu0
  %v750 = vadd.f32 0.0, %v749
  %v751 = vpop.f32.mrb[0].mxu0
  %752 = vmatprep.mubr.f32.mxu0 0.0
  %753 = vmatmul.mubr.f32.gmra.mrb[0].mxu0 %v670
  %v754 = vpop.f32.mrb[0].mxu0
  %v755 = vadd.f32 0.0, %v754
  %v756 = vpop.f32.mrb[0].mxu0
  %757 = vmatprep.mubr.f32.mxu0 0.0
  %758 = vmatmul.mubr.f32.gmra.mrb[0].mxu0 %v675
  %v759 = vpop.f32.mrb[0].mxu0
  %v760 = vadd.f32 0.0, %v759
  %v761 = vpop.f32.mrb[0].mxu0
  %762 = vdwg.mxu0
  %763 = vmatprep.subr.mxu0 0.0
  %764 = vmatpush1.msra.mxu0 %v75
  %765 = vmatprep.subr.mxu0 0.0
  %766 = vmatpush1.msra.mxu0 %v76
  %767 = vmatprep.subr.mxu0 0.0
  %768 = vmatpush1.msra.mxu0 %v77
  %769 = vmatprep.subr.mxu0 0.0
  %770 = vmatpush1.msra.mxu0 %v78
  %771 = vmatprep.subr.mxu0 0.0
  %772 = vmatpush1.msra.mxu0 %v79
  %773 = vmatprep.subr.mxu0 0.0
  %774 = vmatpush1.msra.mxu0 %v80
  %775 = vmatprep.subr.mxu0 0.0
  %776 = vmatpush1.msra.mxu0 %v81
  %777 = vmatprep.subr.mxu0 0.0
  %778 = vmatpush1.msra.mxu0 %v82
  %779 = vmatprep.subr.mxu0 0.0
  %780 = vmatpush1.msra.mxu0 %v83
  %781 = vmatprep.subr.mxu0 0.0
  %782 = vmatpush1.msra.mxu0 %v84
  %783 = vmatprep.subr.mxu0 0.0
  %784 = vmatpush1.msra.mxu0 %v85
  %785 = vmatprep.subr.mxu0 0.0
  %786 = vmatpush1.msra.mxu0 %v86
  %787 = vmatprep.subr.mxu0 0.0
  %788 = vmatpush1.msra.mxu0 %v87
  %789 = vmatprep.subr.mxu0 0.0
  %790 = vmatpush1.msra.mxu0 %v88
  %791 = vmatprep.subr.mxu0 0.0
  %792 = vmatpush1.msra.mxu0 %v89
  %793 = vmatprep.subr.mxu0 0.0
  %794 = vmatpush1.msra.mxu0 %v90
  %795 = vmatprep.subr.mxu0 0.0
  %796 = vmatpush1.msra.mxu0 0.0
  %797 = vmatprep.subr.mxu0 0.0
  %798 = vmatpush1.msra.mxu0 0.0
  %799 = vmatprep.subr.mxu0 0.0
  %800 = vmatpush1.msra.mxu0 0.0
  %801 = vmatprep.subr.mxu0 0.0
  %802 = vmatpush1.msra.mxu0 0.0
  %803 = vmatprep.subr.mxu0 0.0
  %804 = vmatpush1.msra.mxu0 0.0
  %805 = vmatprep.subr.mxu0 0.0
  %806 = vmatpush1.msra.mxu0 0.0
  %807 = vmatprep.subr.mxu0 0.0
  %808 = vmatpush1.msra.mxu0 0.0
  %809 = vmatprep.subr.mxu0 0.0
  %810 = vmatpush1.msra.mxu0 0.0
  %811 = vmatprep.subr.mxu0 0.0
  %812 = vmatpush1.msra.mxu0 0.0
  %813 = vmatprep.subr.mxu0 0.0
  %814 = vmatpush1.msra.mxu0 0.0
  %815 = vmatprep.subr.mxu0 0.0
  %816 = vmatpush1.msra.mxu0 0.0
  %817 = vmatprep.subr.mxu0 0.0
  %818 = vmatpush1.msra.mxu0 0.0
  %819 = vmatprep.subr.mxu0 0.0
  %820 = vmatpush1.msra.mxu0 0.0
  %821 = vmatprep.subr.mxu0 0.0
  %822 = vmatpush1.msra.mxu0 0.0
  %823 = vmatprep.subr.mxu0 0.0
  %824 = vmatpush1.msra.mxu0 0.0
  %825 = vmatprep.subr.mxu0 0.0
  %826 = vmatpush1.msra.mxu0 0.0
  %827 = vmatprep.mubr.f32.mxu0 0.0
  %828 = vmatmul.mubr.f32.gmra.mrb[0].mxu0 %v588
  %v829 = vpop.f32.mrb[0].mxu0
  %v830 = vadd.f32 %v745, %v829
  %v831 = vpop.f32.mrb[0].mxu0
  %832 = vmatprep.mubr.f32.mxu0 0.0
  %833 = vmatmul.mubr.f32.gmra.mrb[0].mxu0 %v589
  %v834 = vpop.f32.mrb[0].mxu0
  %v835 = vadd.f32 %v750, %v834
  %v836 = vpop.f32.mrb[0].mxu0
  %837 = vmatprep.mubr.f32.mxu0 0.0
  %838 = vmatmul.mubr.f32.gmra.mrb[0].mxu0 %v590
  %v839 = vpop.f32.mrb[0].mxu0
  %v840 = vadd.f32 %v755, %v839
  %v841 = vpop.f32.mrb[0].mxu0
  %842 = vmatprep.mubr.f32.mxu0 0.0
  %843 = vmatmul.mubr.f32.gmra.mrb[0].mxu0 %v591
  %v844 = vpop.f32.mrb[0].mxu0
  %v845 = vadd.f32 %v760, %v844
  %v846 = vpop.f32.mrb[0].mxu0
  %847 = vdwg.mxu0
  %848 = vmatprep.subr.mxu0 0.0
  %849 = vmatpush1.msra.mxu0 %v660
  %850 = vmatprep.subr.mxu0 0.0
  %851 = vmatpush1.msra.mxu0 %v665
  %852 = vmatprep.subr.mxu0 0.0
  %853 = vmatpush1.msra.mxu0 %v670
  %854 = vmatprep.subr.mxu0 0.0
  %855 = vmatpush1.msra.mxu0 %v675
  %856 = vmatprep.subr.mxu0 0.0
  %857 = vmatpush1.msra.mxu0 0.0
  %858 = vmatprep.subr.mxu0 0.0
  %859 = vmatpush1.msra.mxu0 0.0
  %860 = vmatprep.subr.mxu0 0.0
  %861 = vmatpush1.msra.mxu0 0.0
  %862 = vmatprep.subr.mxu0 0.0
  %863 = vmatpush1.msra.mxu0 0.0
  %864 = vmatprep.subr.mxu0 0.0
  %865 = vmatpush1.msra.mxu0 0.0
  %866 = vmatprep.subr.mxu0 0.0
  %867 = vmatpush1.msra.mxu0 0.0
  %868 = vmatprep.subr.mxu0 0.0
  %869 = vmatpush1.msra.mxu0 0.0
  %870 = vmatprep.subr.mxu0 0.0
  %871 = vmatpush1.msra.mxu0 0.0
  %872 = vmatprep.subr.mxu0 0.0
  %873 = vmatpush1.msra.mxu0 0.0
  %874 = vmatprep.subr.mxu0 0.0
  %875 = vmatpush1.msra.mxu0 0.0
  %876 = vmatprep.subr.mxu0 0.0
  %877 = vmatpush1.msra.mxu0 0.0
  %878 = vmatprep.subr.mxu0 0.0
  %879 = vmatpush1.msra.mxu0 0.0
  %880 = vmatprep.subr.mxu0 0.0
  %881 = vmatpush1.msra.mxu0 0.0
  %882 = vmatprep.subr.mxu0 0.0
  %883 = vmatpush1.msra.mxu0 0.0
  %884 = vmatprep.subr.mxu0 0.0
  %885 = vmatpush1.msra.mxu0 0.0
  %886 = vmatprep.subr.mxu0 0.0
  %887 = vmatpush1.msra.mxu0 0.0
  %888 = vmatprep.subr.mxu0 0.0
  %889 = vmatpush1.msra.mxu0 0.0
  %890 = vmatprep.subr.mxu0 0.0
  %891 = vmatpush1.msra.mxu0 0.0
  %892 = vmatprep.subr.mxu0 0.0
  %893 = vmatpush1.msra.mxu0 0.0
  %894 = vmatprep.subr.mxu0 0.0
  %895 = vmatpush1.msra.mxu0 0.0
  %896 = vmatprep.subr.mxu0 0.0
  %897 = vmatpush1.msra.mxu0 0.0
  %898 = vmatprep.subr.mxu0 0.0
  %899 = vmatpush1.msra.mxu0 0.0
  %900 = vmatprep.subr.mxu0 0.0
  %901 = vmatpush1.msra.mxu0 0.0
  %902 = vmatprep.subr.mxu0 0.0
  %903 = vmatpush1.msra.mxu0 0.0
  %904 = vmatprep.subr.mxu0 0.0
  %905 = vmatpush1.msra.mxu0 0.0
  %906 = vmatprep.subr.mxu0 0.0
  %907 = vmatpush1.msra.mxu0 0.0
  %908 = vmatprep.subr.mxu0 0.0
  %909 = vmatpush1.msra.mxu0 0.0
  %910 = vmatprep.subr.mxu0 0.0
  %911 = vmatpush1.msra.mxu0 0.0
  %912 = vmatprep.mubr.f32.mxu0 0.0
  %913 = vmatmul.mubr.f32.gmra.mrb[0].mxu0 %v130
  %v914 = vpop.f32.mrb[0].mxu0
  %v915 = vadd.f32 0.0, %v914
  %v916 = vpop.f32.mrb[0].mxu0
  %917 = vmatprep.mubr.f32.mxu0 0.0
  %918 = vmatmul.mubr.f32.gmra.mrb[0].mxu0 %v133
  %v919 = vpop.f32.mrb[0].mxu0
  %v920 = vadd.f32 0.0, %v919
  %v921 = vpop.f32.mrb[0].mxu0
  %922 = vmatprep.mubr.f32.mxu0 0.0
  %923 = vmatmul.mubr.f32.gmra.mrb[0].mxu0 %v136
  %v924 = vpop.f32.mrb[0].mxu0
  %v925 = vadd.f32 0.0, %v924
  %v926 = vpop.f32.mrb[0].mxu0
  %927 = vmatprep.mubr.f32.mxu0 0.0
  %928 = vmatmul.mubr.f32.gmra.mrb[0].mxu0 %v139
  %v929 = vpop.f32.mrb[0].mxu0
  %v930 = vadd.f32 0.0, %v929
  %v931 = vpop.f32.mrb[0].mxu0
  %932 = vdwg.mxu0
  %v933 = vmul.f32 %v915, 2.0
  %v934 = vmul.f32 %v920, 2.0
  %v935 = vmul.f32 %v925, 2.0
  %v936 = vmul.f32 %v930, 2.0
  %v937 = vsub.f32 %v933, %v588
  %v938 = vsub.f32 %v934, %v589
  %v939 = vsub.f32 %v935, %v590
  %v940 = vsub.f32 %v936, %v591
  %941 = vmatprep.subr.mxu0 0.0
  %942 = vmatpush1.msra.mxu0 %v107
  %943 = vmatprep.subr.mxu0 0.0
  %944 = vmatpush1.msra.mxu0 %v108
  %945 = vmatprep.subr.mxu0 0.0
  %946 = vmatpush1.msra.mxu0 %v109
  %947 = vmatprep.subr.mxu0 0.0
  %948 = vmatpush1.msra.mxu0 %v110
  %949 = vmatprep.subr.mxu0 0.0
  %950 = vmatpush1.msra.mxu0 %v111
  %951 = vmatprep.subr.mxu0 0.0
  %952 = vmatpush1.msra.mxu0 %v112
  %953 = vmatprep.subr.mxu0 0.0
  %954 = vmatpush1.msra.mxu0 %v113
  %955 = vmatprep.subr.mxu0 0.0
  %956 = vmatpush1.msra.mxu0 %v114
  %957 = vmatprep.subr.mxu0 0.0
  %958 = vmatpush1.msra.mxu0 %v115
  %959 = vmatprep.subr.mxu0 0.0
  %960 = vmatpush1.msra.mxu0 %v116
  %961 = vmatprep.subr.mxu0 0.0
  %962 = vmatpush1.msra.mxu0 %v117
  %963 = vmatprep.subr.mxu0 0.0
  %964 = vmatpush1.msra.mxu0 %v118
  %965 = vmatprep.subr.mxu0 0.0
  %966 = vmatpush1.msra.mxu0 %v119
  %967 = vmatprep.subr.mxu0 0.0
  %968 = vmatpush1.msra.mxu0 %v120
  %969 = vmatprep.subr.mxu0 0.0
  %970 = vmatpush1.msra.mxu0 %v121
  %971 = vmatprep.subr.mxu0 0.0
  %972 = vmatpush1.msra.mxu0 %v122
  %973 = vmatprep.subr.mxu0 0.0
  %974 = vmatpush1.msra.mxu0 0.0
  %975 = vmatprep.subr.mxu0 0.0
  %976 = vmatpush1.msra.mxu0 0.0
  %977 = vmatprep.subr.mxu0 0.0
  %978 = vmatpush1.msra.mxu0 0.0
  %979 = vmatprep.subr.mxu0 0.0
  %980 = vmatpush1.msra.mxu0 0.0
  %981 = vmatprep.subr.mxu0 0.0
  %982 = vmatpush1.msra.mxu0 0.0
  %983 = vmatprep.subr.mxu0 0.0
  %984 = vmatpush1.msra.mxu0 0.0
  %985 = vmatprep.subr.mxu0 0.0
  %986 = vmatpush1.msra.mxu0 0.0
  %987 = vmatprep.subr.mxu0 0.0
  %988 = vmatpush1.msra.mxu0 0.0
  %989 = vmatprep.subr.mxu0 0.0
  %990 = vmatpush1.msra.mxu0 0.0
  %991 = vmatprep.subr.mxu0 0.0
  %992 = vmatpush1.msra.mxu0 0.0
  %993 = vmatprep.subr.mxu0 0.0
  %994 = vmatpush1.msra.mxu0 0.0
  %995 = vmatprep.subr.mxu0 0.0
  %996 = vmatpush1.msra.mxu0 0.0
  %997 = vmatprep.subr.mxu0 0.0
  %998 = vmatpush1.msra.mxu0 0.0
  %999 = vmatprep.subr.mxu0 0.0
  %1000 = vmatpush1.msra.mxu0 0.0
  %1001 = vmatprep.subr.mxu0 0.0
  %1002 = vmatpush1.msra.mxu0 0.0
  %1003 = vmatprep.subr.mxu0 0.0
  %1004 = vmatpush1.msra.mxu0 0.0
  %1005 = vmatprep.mubr.f32.mxu0 0.0
  %1006 = vmatmul.mubr.f32.gmra.mrb[0].mxu0 %v937
  %v1007 = vpop.f32.mrb[0].mxu0
  %v1008 = vadd.f32 0.0, %v1007
  %v1009 = vpop.f32.mrb[0].mxu0
  %1010 = vmatprep.mubr.f32.mxu0 0.0
  %1011 = vmatmul.mubr.f32.gmra.mrb[0].mxu0 %v938
  %v1012 = vpop.f32.mrb[0].mxu0
  %v1013 = vadd.f32 0.0, %v1012
  %v1014 = vpop.f32.mrb[0].mxu0
  %1015 = vmatprep.mubr.f32.mxu0 0.0
  %1016 = vmatmul.mubr.f32.gmra.mrb[0].mxu0 %v939
  %v1017 = vpop.f32.mrb[0].mxu0
  %v1018 = vadd.f32 0.0, %v1017
  %v1019 = vpop.f32.mrb[0].mxu0
  %1020 = vmatprep.mubr.f32.mxu0 0.0
  %1021 = vmatmul.mubr.f32.gmra.mrb[0].mxu0 %v940
  %v1022 = vpop.f32.mrb[0].mxu0
  %v1023 = vadd.f32 0.0, %v1022
  %v1024 = vpop.f32.mrb[0].mxu0
  %1025 = vdwg.mxu0
  %v1026 = vadd.f32 %v830, %v1008
  %v1027 = vadd.f32 %v835, %v1013
  %v1028 = vadd.f32 %v840, %v1018
  %v1029 = vadd.f32 %v845, %v1023
  %v1031 = vlaneseq
  %v1032 = vshrl.u32 %v1031, 7
  %v1033 = vsub.s32 0, %v1032
  %v1034 = vrot.slane %v592, %v1033
  %v1036 = vadd.f32 %v1026, %v1034
  %v1037 = vadd.f32 %v1027, %v1034
  %v1038 = vadd.f32 %v1028, %v1034
  %v1039 = vadd.f32 %v1029, %v1034
  %1040 = vmax.xlane.f32.xlu0 %v1036
  %v1041 = vpop.xlane.xlu0 %1040
  %1042 = vmax.xlane.f32.xlu0 %v1037
  %v1043 = vpop.xlane.xlu0 %1042
  %1044 = vmax.xlane.f32.xlu0 %v1038
  %v1045 = vpop.xlane.xlu0 %1044
  %1046 = vmax.xlane.f32.xlu0 %v1039
  %v1047 = vpop.xlane.xlu0 %1046
  %v1048 = vsub.f32 %v1036, %v1041
  %v1049 = vsub.f32 %v1037, %v1043
  %v1050 = vsub.f32 %v1038, %v1045
  %v1051 = vsub.f32 %v1039, %v1047
  %v1052 = vmul.f32 %v1048, 1.442695
  %v1053 = vpow.pop %v1052
  %v1054 = vmul.f32 %v1049, 1.442695
  %v1055 = vpow.pop %v1054
  %v1056 = vmul.f32 %v1050, 1.442695
  %v1057 = vpow.pop %v1056
  %v1058 = vmul.f32 %v1051, 1.442695
  %v1059 = vpow.pop %v1058
  %1060 = vadd.xlane.f32.xlu0 %v1053
  %v1061 = vpop.xlane.xlu0 %1060
  %1062 = vadd.xlane.f32.xlu0 %v1055
  %v1063 = vpop.xlane.xlu0 %1062
  %1064 = vadd.xlane.f32.xlu0 %v1057
  %v1065 = vpop.xlane.xlu0 %1064
  %1066 = vadd.xlane.f32.xlu0 %v1059
  %v1067 = vpop.xlane.xlu0 %1066
  %v1068 = vlog2.pop %v1061
  %v1069 = vmul.f32 %v1068, 0.6931472
  %v1070 = vlog2.pop %v1063
  %v1071 = vmul.f32 %v1070, 0.6931472
  %v1072 = vlog2.pop %v1065
  %v1073 = vmul.f32 %v1072, 0.6931472
  %v1074 = vlog2.pop %v1067
  %v1075 = vmul.f32 %v1074, 0.6931472
  %v1076 = vsub.f32 %v1048, %v1069
  %v1077 = vsub.f32 %v1049, %v1071
  %v1078 = vsub.f32 %v1050, %v1073
  %v1079 = vsub.f32 %v1051, %v1075
  %1080 = vst [vmem:[%s6] sm:$0xff] %v1076
  %1081 = vst [vmem:[%s6 + $0x8] sm:$0xff] %v1077
  %1082 = vst [vmem:[%s6 + $0x10] sm:$0xff] %v1078
  %1083 = vst [vmem:[%s6 + $0x18] sm:$0xff] %v1079
  // Predicated region
  $region26: #{chebnet_forward.1} parent=0 // pred_check
    _
  $region27: #{chebnet_forward.1} parent=0 // pred_check_branch
    %1085 = sbr.rel (0) target = $region29
  $region28: #{chebnet_forward.1} parent=0 // pred_region
    _
  $region29: #{chebnet_forward.1} parent=0 // pred_fallthru
    _
  // Predicated region
  $region30: #{chebnet_forward.1} parent=0 // pred_check
    _
  $region31: #{chebnet_forward.1} parent=0 // pred_check_branch
    %1087 = sbr.rel (0) target = $region33
  $region32: #{chebnet_forward.1} parent=0 // pred_region
    _
  $region33: #{chebnet_forward.1} parent=0 // pred_fallthru
    _

</llo_original>
